<compile_context>
chip_gen: v7x
topology: tpu7x:2x2x1
jax: 0.10.0
libtpu: 0.0.40
codegen_flags: <defaults>
</compile_context>

<pallas_src>
import functools

import jax
import jax.numpy as jnp
from jax.experimental import pallas as pl
from jax.experimental.pallas import tpu as pltpu


def _round_up(x, m):
    return ((x + m - 1) // m) * m


def _pick_tile_n(n, c_pad, k_pad, budget_bytes=24 * 1024 * 1024):
    """Largest 8-aligned row tile that fits the VMEM budget, with >=2 grid steps."""
    per_row = 2 * (k_pad + c_pad) * 4          # double-buffered A row + out row (f32)
    fixed = 2 * k_pad * c_pad * 4              # coefficient matrix (worst case 2 bufs)
    cap = max(8, (budget_bytes - fixed) // max(per_row, 1))
    n_rows = _round_up(n, 8)
    tile = min(2048, cap, n_rows)
    tile = max(8, (tile // 8) * 8)
    # v7x has 2 TensorCores sharing the "parallel" grid axis: prefer >= 2 steps.
    while tile > 8 and (n_rows + tile - 1) // tile < 2:
        tile = max(8, _round_up(tile // 2, 8))
    return tile


def rbf_kernel(a_ref, b_ref, out_ref):
    # a_ref:   (TN, KPAD)    = [vals^2 | vals | 1 | 0-padding]
    # b_ref:   (KPAD, CPAD)  = [-w^2 ; 2*c*w^2 ; -sum_d (c*w)^2 ; 0-padding]
    # out_ref: (TN, CPAD)
    # acc[n, c] = -sum_d ((v[n,d] - c[c,d]) * w[c,d])^2   (signs folded into B)
    acc = jnp.dot(
        a_ref[...],
        b_ref[...],
        preferred_element_type=jnp.float32,
        precision=jax.lax.Precision.HIGHEST,
    )
    out_ref[...] = jnp.exp(acc).astype(out_ref.dtype)


def rbf_layer(vals, centers, length_scales, *, tile_n=None, out_dtype=None):
    """Pallas implementation of RBFLayer.forward.

    out_dtype: optional (e.g. jnp.bfloat16) to halve HBM writeback of the
    (write-bound) result; defaults to vals.dtype to match PyTorch semantics.
    """
    n, dim = vals.shape
    count, dim2 = centers.shape
    assert dim == dim2, "centers dim mismatch"
    out_dtype = vals.dtype if out_dtype is None else out_dtype

    f32 = jnp.float32
    k_logical = 2 * dim + 1
    k_pad = _round_up(k_logical, 8)          # sublane-aligned contraction dim
    c_pad = _round_up(count, 128)            # lane-dense COUNT

    # ---- one-time parameter prep (wrapper-side, O(COUNT*DIM)) -----------------
    c_f = centers.astype(f32)
    w = 1.0 / (2.0 * length_scales.astype(f32))        # (COUNT, DIM)
    w2 = w * w
    b_vsq = -w2.T                                       # coeff of v^2     (DIM, COUNT)
    b_v = (2.0 * c_f * w2).T                            # coeff of v       (DIM, COUNT)
    b_bias = -jnp.sum((c_f * w) ** 2, axis=1)[None, :]  # constant term    (1,   COUNT)
    b_mat = jnp.concatenate([b_vsq, b_v, b_bias], axis=0)          # (2*DIM+1, COUNT)
    b_padded = jnp.zeros((k_pad, c_pad), f32)
    b_padded = b_padded.at[:k_logical, :count].set(b_mat)          # padded lanes/rows = 0

    # ---- build A = [vals^2 | vals | 1], pad rows & contraction dim ------------
    if tile_n is None:
        tile_n = _pick_tile_n(n, c_pad, k_pad)
    tile_n = max(8, _round_up(min(tile_n, _round_up(n, 8)), 8))
    n_pad = _round_up(n, tile_n)

    vals_f = vals.astype(f32)
    a_mat = jnp.concatenate(
        [vals_f * vals_f, vals_f, jnp.ones((n, 1), f32)], axis=1)  # (N, 2*DIM+1)
    a_padded = jnp.zeros((n_pad, k_pad), f32)
    a_padded = a_padded.at[:n, :k_logical].set(a_mat)              # padded rows = 0

    grid = (n_pad // tile_n,)

    out = pl.pallas_call(
        rbf_kernel,
        out_shape=jax.ShapeDtypeStruct((n_pad, c_pad), out_dtype),
        grid_spec=pltpu.PrefetchScalarGridSpec(
            num_scalar_prefetch=0,
            grid=grid,
            in_specs=[
                pl.BlockSpec((tile_n, k_pad), lambda i: (i, 0)),   # A row tile
                pl.BlockSpec((k_pad, c_pad), lambda i: (0, 0)),    # coeffs (resident)
            ],
            out_specs=pl.BlockSpec((tile_n, c_pad), lambda i: (i, 0)),
        ),
        compiler_params=pltpu.CompilerParams(
            dimension_semantics=("parallel",),
            vmem_limit_bytes=32 * 1024 * 1024,
        ),
    )(a_padded, b_padded)

    # Strip row / lane padding only when padding was actually added.
    # (For COUNT << 128 consumers that can mask, returning the padded slab
    #  avoids an extra full-result HBM copy — kept here for exact semantics.)
    if n_pad != n or c_pad != count:
        out = out[:n, :count]
    return out


def rbf_reference(vals, centers, length_scales):
    # Pure-JAX reference matching the PyTorch forward exactly.
    diff = (vals[:, None, :] - centers[None, :, :]) / (2.0 * length_scales[None, :, :])
    return jnp.exp(-jnp.sum(diff ** 2, axis=-1))


if __name__ == "__main__":
    DIM = 8
    COUNT = 32
    N = 64

    key = jax.random.PRNGKey(0)
    k_vals, k_ls, k_c = jax.random.split(key, 3)

    vals = jax.random.normal(k_vals, (N, DIM), dtype=jnp.float32)
    # Mirror torch.rand(count, dim) + 0.01 and torch.rand(count, dim).
    length_scales = jax.random.uniform(k_ls, (COUNT, DIM), dtype=jnp.float32) + 0.01
    centers = jax.random.uniform(k_c, (COUNT, DIM), dtype=jnp.float32)

    out = rbf_layer(vals, centers, length_scales)
    out = jax.block_until_ready(out)

    ref = rbf_reference(vals, centers, length_scales)
    assert out.shape == (N, COUNT)
    # The expanded-square MXU formulation (v^2*w^2 - 2*v*c*w^2 + c^2*w^2) carries
    # mild cancellation error when vals ~ centers with small length scales, so the
    # tolerance is 1e-3 rather than 1e-5; f32 accumulation + HIGHEST precision keep
    # the typical error far below this.
    assert jnp.allclose(out, ref, rtol=1e-3, atol=1e-3), "mismatch vs reference"

    print("KERNEL_OK")
</pallas_src>

<mosaic_0001>
module attributes {stable_mosaic.version = 11 : i64} {
  func.func @rbf_kernel(%arg0: i32, %arg1: memref<32x24xf32, #tpu.memory_space<vmem>>, %arg2: memref<24x128xf32, #tpu.memory_space<vmem>>, %arg3: memref<32x128xf32, #tpu.memory_space<vmem>>) attributes {dimension_semantics = [#tpu.dimension_semantics<parallel>], iteration_bounds = array<i64: 2>, scalar_prefetch = 0 : i64, scratch_operands = 0 : i64, tpu.core_type = #tpu.core_type<tc>, window_params = [{transform_indices = @transform_0, window_bounds = array<i64: 32, 24>}, {pipeline_mode = #tpu.pipeline_mode<synchronous>, transform_indices = @transform_1, window_bounds = array<i64: 24, 128>}, {transform_indices = @transform_2, window_bounds = array<i64: 32, 128>}]} {
    %c0 = arith.constant 0 : index
    %c0_0 = arith.constant 0 : index
    %0 = vector.load %arg1[%c0, %c0_0] : memref<32x24xf32, #tpu.memory_space<vmem>>, vector<32x24xf32>
    %c0_1 = arith.constant 0 : index
    %c0_2 = arith.constant 0 : index
    %1 = vector.load %arg2[%c0_1, %c0_2] : memref<24x128xf32, #tpu.memory_space<vmem>>, vector<24x128xf32>
    %cst = arith.constant dense<0.000000e+00> : vector<32x128xf32>
    %2 = tpu.matmul %0, %1, %cst {dimension_numbers = #tpu.dot_dimension_numbers<[1], [0], [0], [1], [0, 0, 1, 1], [], []>, precision = #tpu.contract_precision<fp32>} : vector<32x24xf32>, vector<24x128xf32>, vector<32x128xf32> -> vector<32x128xf32>
    %3 = math.exp %2 : vector<32x128xf32>
    %c0_3 = arith.constant 0 : index
    %c0_4 = arith.constant 0 : index
    %4 = vector.load %arg3[%c0_3, %c0_4] : memref<32x128xf32, #tpu.memory_space<vmem>>, vector<32x128xf32>
    tpu.vector_store %arg3[%c0_3, %c0_4], %3 {strides = array<i32>} : memref<32x128xf32, #tpu.memory_space<vmem>>, vector<32x128xf32>,
    return
  }
  func.func @transform_0(%arg0: i32) -> (i32, i32) {
    %c0_i32 = arith.constant 0 : i32
    %c0_i32_0 = arith.constant 0 : i32
    return %arg0, %c0_i32 : i32, i32
  }
  func.func @transform_1(%arg0: i32) -> (i32, i32) {
    %c0_i32 = arith.constant 0 : i32
    %c0_i32_0 = arith.constant 0 : i32
    %c0_i32_1 = arith.constant 0 : i32
    return %c0_i32, %c0_i32_0 : i32, i32
  }
  func.func @transform_2(%arg0: i32) -> (i32, i32) {
    %c0_i32 = arith.constant 0 : i32
    %c0_i32_0 = arith.constant 0 : i32
    return %arg0, %c0_i32 : i32, i32
  }
}

</mosaic_0001>

<llo_original>
// kernel: tpu_custom_call.1
$region0: #{tpu_custom_call.1}
  #allocation0 [shape = 'u32[]', space=smem, size = 0x4, offset = 0x4, fixed_abs, tag = 'smem constant byte address 0x4 - core index']
  #allocation1 [shape = 'u32[144,128]{1,0:T(1,128)}', space=vmem, size = 0x12000, scoped, tag = 'internal scratch']
  %s0 = inlined_call_operand.vmem [shape: f32[64,24], index: 0, kind: input, shape index: {}]
  %s1 = inlined_call_operand.vmem [shape: f32[24,128], index: 1, kind: input, shape index: {}]
  %s2 = inlined_call_operand.hbm [shape: f32[64,128], index: 2, kind: output, shape index: {}]
  %s3 = sld [smem:[#allocation0]]
  $region41: #{tpu_custom_call.1} parent=0
    _
  %s5 = ssub.s32 1, %s3
  %s6 = scalar_select 0, %s5, %s3
  $region1: #{tpu_custom_call.1} parent=0
    #allocation2 [shape = 'u8[32768]{0}', space=vmem, size = 0x8000, scoped, tag = 'output window, operand 0']
    #allocation3 [shape = 's32[2]{0}', space=sflag, size = 0x8, scoped, tag = 'scoped memory for tpu_custom_call.1']
    %7 = vsyncpa [#allocation3], 0
    %s8 = scalar_lea.sflag [#allocation3], 1
    %9 = vsyncpa %s8, 0
    loop: start=0, step=1, limit=4
    $region2: #{tpu_custom_call.1} parent=1 // loop_pre_header
      _
    $region3: #{tpu_custom_call.1} parent=1 // loop_header
      %s11 = sphi 0, %s15
      %p12 = scmp.ge.s32.totalorder %s11, 4
      %s21 = sphi 0, %s23
      %s24 = sphi 0, %s21
      %s25 = sphi 0, %s24
      %s41 = sphi 0, %s25
      %s45 = sphi 0, %s45
      %s47 = sphi 0, %s45
      %s48 = sphi 0, %s47
      %s62 = sphi 0, %s48
      %s68 = sphi 0, %s70
      %s71 = sphi 0, %s68
      %s72 = sphi 0, %s71
      %s88 = sphi 0, %s72
    $region4: #{tpu_custom_call.1} parent=1 // loop_header_branch
      %14 = sbr.rel (%p12) target = $region8
    $region5: #{tpu_custom_call.1} parent=1 // loop_body
      %s16 = ssub.s32 %s11, 1
      %s17 = ssub.s32 %s11, 2
      %s18 = sadd.s32 %s11, 1
      %s19 = ssub.s32 %s11, %s18
      %p20 = scmp.eq.s32.totalorder %s19, 0
      %s22 = sadd.s32 %s21, 1
      %s23 = scalar_select %p20, %s21, %s22
      %p26 = pneg %p20
      %p27 = scmp.eq.s32.totalorder %s11, 1
      %p28 = por %p26, %p27
      %p29 = scmp.ne.s32.totalorder %s21, %s24
      %p30 = scmp.eq.s32.totalorder %s11, 0
      %p31 = por %p29, %p30
      %p32 = scmp.ne.s32.totalorder %s21, %s24
      %p33 = scmp.eq.s32.totalorder %s16, 1
      %p34 = por %p32, %p33
      %p35 = scmp.ne.s32.totalorder %s24, %s25
      %p36 = scmp.eq.s32.totalorder %s16, 0
      %p37 = por %p35, %p36
      %p38 = scmp.ne.s32.totalorder %s24, %s25
      %p39 = scmp.eq.s32.totalorder %s17, 1
      %p40 = por %p38, %p39
      %p42 = scmp.ne.s32.totalorder %s25, %s41
      %p43 = scmp.eq.s32.totalorder %s17, 0
      %p44 = por %p42, %p43
      %s46 = sadd.s32 %s45, 1
      %p49 = scmp.eq.s32.totalorder %s11, 1
      %p50 = scmp.ne.s32.totalorder %s45, %s47
      %p51 = scmp.eq.s32.totalorder %s11, 0
      %p52 = por %p50, %p51
      %p53 = scmp.ne.s32.totalorder %s45, %s47
      %p54 = scmp.eq.s32.totalorder %s16, 1
      %p55 = por %p53, %p54
      %p56 = scmp.ne.s32.totalorder %s47, %s48
      %p57 = scmp.eq.s32.totalorder %s16, 0
      %p58 = por %p56, %p57
      %p59 = scmp.ne.s32.totalorder %s47, %s48
      %p60 = scmp.eq.s32.totalorder %s17, 1
      %p61 = por %p59, %p60
      %p63 = scmp.ne.s32.totalorder %s48, %s62
      %p64 = scmp.eq.s32.totalorder %s17, 0
      %p65 = por %p63, %p64
      %s66 = ssub.s32 %s11, %s18
      %p67 = scmp.eq.s32.totalorder %s66, 0
      %s69 = sadd.s32 %s68, 1
      %s70 = scalar_select %p67, %s68, %s69
      %p73 = pneg %p67
      %p74 = scmp.eq.s32.totalorder %s11, 1
      %p75 = por %p73, %p74
      %p76 = scmp.ne.s32.totalorder %s68, %s71
      %p77 = scmp.eq.s32.totalorder %s11, 0
      %p78 = por %p76, %p77
      %p79 = scmp.ne.s32.totalorder %s68, %s71
      %p80 = scmp.eq.s32.totalorder %s16, 1
      %p81 = por %p79, %p80
      %p82 = scmp.ne.s32.totalorder %s71, %s72
      %p83 = scmp.eq.s32.totalorder %s16, 0
      %p84 = por %p82, %p83
      %p85 = scmp.ne.s32.totalorder %s71, %s72
      %p86 = scmp.eq.s32.totalorder %s17, 1
      %p87 = por %p85, %p86
      %p89 = scmp.ne.s32.totalorder %s72, %s88
      %p90 = scmp.eq.s32.totalorder %s17, 0
      %p91 = por %p89, %p90
      %p92 = scmp.le.s32.totalorder 1, %s11
      %p93 = scmp.lt.s32.totalorder %s11, 3
      %p94 = pnand %p92, %p93
      %p95 = pneg %p94
      // Predicated region
      $region9: #{tpu_custom_call.1} parent=5 // pred_check
        _
      $region10: #{tpu_custom_call.1} parent=5 // pred_check_branch
        %97 = sbr.rel (%p94) target = $region12
      $region11: #{tpu_custom_call.1} parent=5 // pred_region
        %s98 = ssub.s32 %s11, 1
        // Predicated region
        $region13: #{tpu_custom_call.1} parent=11 // pred_check
          %p99 = pneg %p58
        $region14: #{tpu_custom_call.1} parent=11 // pred_check_branch
          %101 = sbr.rel (%p99) target = $region16
        $region15: #{tpu_custom_call.1} parent=11 // pred_region
          _
        $region16: #{tpu_custom_call.1} parent=11 // pred_fallthru
          _
      $region12: #{tpu_custom_call.1} parent=5 // pred_fallthru
        _
      %p102 = scmp.lt.s32.totalorder %s11, 2
      // Predicated region
      $region17: #{tpu_custom_call.1} parent=5 // pred_check
        %p103 = pneg %p102
      $region18: #{tpu_custom_call.1} parent=5 // pred_check_branch
        %105 = sbr.rel (%p103) target = $region20
      $region19: #{tpu_custom_call.1} parent=5 // pred_region
        // Predicated region
        $region21: #{tpu_custom_call.1} parent=19 // pred_check
          %p106 = pneg %p31
        $region22: #{tpu_custom_call.1} parent=19 // pred_check_branch
          %108 = sbr.rel (%p106) target = $region24
        $region23: #{tpu_custom_call.1} parent=19 // pred_region
          %s109 = smul.u32 4, %s11
          %p110 = scmp.lt.s32.totalorder %s109, 7
          %s111 = scalar_select %p110, %s109, 7
          %s112 = smul.addr %s111, 8
          %s113 = scalar_lea.vmem %s0, %s112
          %s114 = smul.u32 4, %s11
        $region24: #{tpu_custom_call.1} parent=19 // pred_fallthru
          _
      $region20: #{tpu_custom_call.1} parent=5 // pred_fallthru
        _
      %p115 = scmp.le.s32.totalorder 1, %s11
      %p116 = scmp.lt.s32.totalorder %s11, 3
      %p117 = pnand %p115, %p116
      %p118 = pneg %p117
      // Predicated region
      $region25: #{tpu_custom_call.1} parent=5 // pred_check
        _
      $region26: #{tpu_custom_call.1} parent=5 // pred_check_branch
        %120 = sbr.rel (%p117) target = $region28
      $region27: #{tpu_custom_call.1} parent=5 // pred_region
        %s121 = ssub.s32 %s11, 1
        %s122 = smul.u32 4, %s16
        %p123 = scmp.lt.s32.totalorder %s122, 7
        %s124 = scalar_select %p123, %s122, 7
        %s125 = smul.addr %s124, 8
        %s126 = scalar_lea.vmem %s0, %s125
        %p127 = pneg %p37
        %p128 = pneg %p34
        %p129 = pneg %p58
        %p130 = pneg %p55
        %p131 = pneg %p84
        %p132 = pneg %p81
        %s133 = sand.u32 %s71, 1
        %s134 = scalar_lea.sflag [#allocation3], %s133
        %s135 = sand.u32 %s71, 1
        %s136 = smul.addr %s135, 32
        %s137 = scalar_lea.vmem [#allocation2], %s136
        %s138 = smul.u32 4, %s16
        %p139 = scmp.lt.s32.totalorder %s138, 7
        %s140 = scalar_select %p139, %s138, 7
        %s141 = smul.addr %s140, 8
        %s142 = scalar_lea.vmem %s0, %s141
        %s143 = smul.u32 4, %s16
        %s144 = smul.u32 4, %s16
        %v145 = vld [vmem:[%s142] sm:$0xff]
        %v146 = vld [vmem:[%s142 + $0x8] sm:$0xff]
        %v147 = vld [vmem:[%s142 + $0x10] sm:$0xff]
        %v148 = vld [vmem:[%s142 + $0x18] sm:$0xff]
        %v149 = vld [vmem:[%s1] sm:$0xff]
        %v150 = vld [vmem:[%s1 + $0x8] sm:$0xff]
        %v151 = vld [vmem:[%s1 + $0x10] sm:$0xff]
        %vm152 = vcmask 195584
        %v154 = vsel %vm152, %v145, 0
        %v157 = vsel %vm152, %v146, 0
        %v160 = vsel %vm152, %v147, 0
        %v163 = vsel %vm152, %v148, 0
        %165 = vmatprep.subr.mxu0 0.0
        %v166 = vand.u32 %v149, 4294901760
        %167 = vmatpush1.msra.mxu0 %v166
        %168 = vmatprep.subr.mxu0 0.0
        %v169 = vand.u32 %v150, 4294901760
        %170 = vmatpush1.msra.mxu0 %v169
        %171 = vmatprep.subr.mxu0 0.0
        %v172 = vand.u32 %v151, 4294901760
        %173 = vmatpush1.msra.mxu0 %v172
        %174 = vmatprep.subr.mxu0 0.0
        %175 = vmatpush1.msra.mxu0 0.0
        %176 = vmatprep.subr.mxu0 0.0
        %177 = vmatpush1.msra.mxu0 0.0
        %178 = vmatprep.subr.mxu0 0.0
        %179 = vmatpush1.msra.mxu0 0.0
        %180 = vmatprep.subr.mxu0 0.0
        %181 = vmatpush1.msra.mxu0 0.0
        %182 = vmatprep.subr.mxu0 0.0
        %183 = vmatpush1.msra.mxu0 0.0
        %184 = vmatprep.subr.mxu0 0.0
        %185 = vmatpush1.msra.mxu0 0.0
        %186 = vmatprep.subr.mxu0 0.0
        %187 = vmatpush1.msra.mxu0 0.0
        %188 = vmatprep.subr.mxu0 0.0
        %189 = vmatpush1.msra.mxu0 0.0
        %190 = vmatprep.subr.mxu0 0.0
        %191 = vmatpush1.msra.mxu0 0.0
        %192 = vmatprep.subr.mxu0 0.0
        %193 = vmatpush1.msra.mxu0 0.0
        %194 = vmatprep.subr.mxu0 0.0
        %195 = vmatpush1.msra.mxu0 0.0
        %196 = vmatprep.subr.mxu0 0.0
        %197 = vmatpush1.msra.mxu0 0.0
        %198 = vmatprep.subr.mxu0 0.0
        %199 = vmatpush1.msra.mxu0 0.0
        %200 = vmatprep.subr.mxu0 0.0
        %201 = vmatpush1.msra.mxu0 0.0
        %202 = vmatprep.subr.mxu0 0.0
        %203 = vmatpush1.msra.mxu0 0.0
        %204 = vmatprep.subr.mxu0 0.0
        %205 = vmatpush1.msra.mxu0 0.0
        %206 = vmatprep.subr.mxu0 0.0
        %207 = vmatpush1.msra.mxu0 0.0
        %208 = vmatprep.subr.mxu0 0.0
        %209 = vmatpush1.msra.mxu0 0.0
        %210 = vmatprep.subr.mxu0 0.0
        %211 = vmatpush1.msra.mxu0 0.0
        %212 = vmatprep.subr.mxu0 0.0
        %213 = vmatpush1.msra.mxu0 0.0
        %214 = vmatprep.subr.mxu0 0.0
        %215 = vmatpush1.msra.mxu0 0.0
        %216 = vmatprep.subr.mxu0 0.0
        %217 = vmatpush1.msra.mxu0 0.0
        %218 = vmatprep.subr.mxu0 0.0
        %219 = vmatpush1.msra.mxu0 0.0
        %220 = vmatprep.subr.mxu0 0.0
        %221 = vmatpush1.msra.mxu0 0.0
        %222 = vmatprep.subr.mxu0 0.0
        %223 = vmatpush1.msra.mxu0 0.0
        %224 = vmatprep.subr.mxu0 0.0
        %225 = vmatpush1.msra.mxu0 0.0
        %226 = vmatprep.subr.mxu0 0.0
        %227 = vmatpush1.msra.mxu0 0.0
        %228 = vmatprep.subr.mxu0 0.0
        %229 = vmatpush1.msra.mxu0 0.0
        %230 = vmatprep.subr.mxu0 0.0
        %231 = vmatpush1.msra.mxu0 0.0
        %232 = vmatprep.mubr.f32.mxu0 0.0
        %v233 = vand.u32 %v154, 4294901760
        %v234 = vsub.f32 %v154, %v233
        %v235 = vand.u32 %v234, 4294901760
        %v236 = vsub.f32 %v234, %v235
        %v237 = vand.u32 %v236, 4294901760
        %238 = vmatmul.mubr.f32.gmra.mrb[0].mxu0 %v237
        %v239 = vpop.f32.mrb[0].mxu0
        %v240 = vadd.f32 0.0, %v239
        %v241 = vpop.f32.mrb[0].mxu0
        %242 = vmatprep.mubr.f32.mxu0 0.0
        %v243 = vand.u32 %v157, 4294901760
        %v244 = vsub.f32 %v157, %v243
        %v245 = vand.u32 %v244, 4294901760
        %v246 = vsub.f32 %v244, %v245
        %v247 = vand.u32 %v246, 4294901760
        %248 = vmatmul.mubr.f32.gmra.mrb[0].mxu0 %v247
        %v249 = vpop.f32.mrb[0].mxu0
        %v250 = vadd.f32 0.0, %v249
        %v251 = vpop.f32.mrb[0].mxu0
        %252 = vmatprep.mubr.f32.mxu0 0.0
        %v253 = vand.u32 %v160, 4294901760
        %v254 = vsub.f32 %v160, %v253
        %v255 = vand.u32 %v254, 4294901760
        %v256 = vsub.f32 %v254, %v255
        %v257 = vand.u32 %v256, 4294901760
        %258 = vmatmul.mubr.f32.gmra.mrb[0].mxu0 %v257
        %v259 = vpop.f32.mrb[0].mxu0
        %v260 = vadd.f32 0.0, %v259
        %v261 = vpop.f32.mrb[0].mxu0
        %262 = vmatprep.mubr.f32.mxu0 0.0
        %v263 = vand.u32 %v163, 4294901760
        %v264 = vsub.f32 %v163, %v263
        %v265 = vand.u32 %v264, 4294901760
        %v266 = vsub.f32 %v264, %v265
        %v267 = vand.u32 %v266, 4294901760
        %268 = vmatmul.mubr.f32.gmra.mrb[0].mxu0 %v267
        %v269 = vpop.f32.mrb[0].mxu0
        %v270 = vadd.f32 0.0, %v269
        %v271 = vpop.f32.mrb[0].mxu0
        %272 = vdwg.mxu0
        %273 = vmatprep.subr.mxu0 0.0
        %v274 = vand.u32 %v149, 4294901760
        %v275 = vsub.f32 %v149, %v274
        %v276 = vand.u32 %v275, 4294901760
        %v277 = vsub.f32 %v275, %v276
        %v278 = vand.u32 %v277, 4294901760
        %279 = vmatpush1.msra.mxu0 %v278
        %280 = vmatprep.subr.mxu0 0.0
        %v281 = vand.u32 %v150, 4294901760
        %v282 = vsub.f32 %v150, %v281
        %v283 = vand.u32 %v282, 4294901760
        %v284 = vsub.f32 %v282, %v283
        %v285 = vand.u32 %v284, 4294901760
        %286 = vmatpush1.msra.mxu0 %v285
        %287 = vmatprep.subr.mxu0 0.0
        %v288 = vand.u32 %v151, 4294901760
        %v289 = vsub.f32 %v151, %v288
        %v290 = vand.u32 %v289, 4294901760
        %v291 = vsub.f32 %v289, %v290
        %v292 = vand.u32 %v291, 4294901760
        %293 = vmatpush1.msra.mxu0 %v292
        %294 = vmatprep.subr.mxu0 0.0
        %295 = vmatpush1.msra.mxu0 0.0
        %296 = vmatprep.subr.mxu0 0.0
        %297 = vmatpush1.msra.mxu0 0.0
        %298 = vmatprep.subr.mxu0 0.0
        %299 = vmatpush1.msra.mxu0 0.0
        %300 = vmatprep.subr.mxu0 0.0
        %301 = vmatpush1.msra.mxu0 0.0
        %302 = vmatprep.subr.mxu0 0.0
        %303 = vmatpush1.msra.mxu0 0.0
        %304 = vmatprep.subr.mxu0 0.0
        %305 = vmatpush1.msra.mxu0 0.0
        %306 = vmatprep.subr.mxu0 0.0
        %307 = vmatpush1.msra.mxu0 0.0
        %308 = vmatprep.subr.mxu0 0.0
        %309 = vmatpush1.msra.mxu0 0.0
        %310 = vmatprep.subr.mxu0 0.0
        %311 = vmatpush1.msra.mxu0 0.0
        %312 = vmatprep.subr.mxu0 0.0
        %313 = vmatpush1.msra.mxu0 0.0
        %314 = vmatprep.subr.mxu0 0.0
        %315 = vmatpush1.msra.mxu0 0.0
        %316 = vmatprep.subr.mxu0 0.0
        %317 = vmatpush1.msra.mxu0 0.0
        %318 = vmatprep.subr.mxu0 0.0
        %319 = vmatpush1.msra.mxu0 0.0
        %320 = vmatprep.subr.mxu0 0.0
        %321 = vmatpush1.msra.mxu0 0.0
        %322 = vmatprep.subr.mxu0 0.0
        %323 = vmatpush1.msra.mxu0 0.0
        %324 = vmatprep.subr.mxu0 0.0
        %325 = vmatpush1.msra.mxu0 0.0
        %326 = vmatprep.subr.mxu0 0.0
        %327 = vmatpush1.msra.mxu0 0.0
        %328 = vmatprep.subr.mxu0 0.0
        %329 = vmatpush1.msra.mxu0 0.0
        %330 = vmatprep.subr.mxu0 0.0
        %331 = vmatpush1.msra.mxu0 0.0
        %332 = vmatprep.subr.mxu0 0.0
        %333 = vmatpush1.msra.mxu0 0.0
        %334 = vmatprep.subr.mxu0 0.0
        %335 = vmatpush1.msra.mxu0 0.0
        %336 = vmatprep.subr.mxu0 0.0
        %337 = vmatpush1.msra.mxu0 0.0
        %338 = vmatprep.subr.mxu0 0.0
        %339 = vmatpush1.msra.mxu0 0.0
        %340 = vmatprep.subr.mxu0 0.0
        %341 = vmatpush1.msra.mxu0 0.0
        %342 = vmatprep.subr.mxu0 0.0
        %343 = vmatpush1.msra.mxu0 0.0
        %344 = vmatprep.subr.mxu0 0.0
        %345 = vmatpush1.msra.mxu0 0.0
        %346 = vmatprep.subr.mxu0 0.0
        %347 = vmatpush1.msra.mxu0 0.0
        %348 = vmatprep.subr.mxu0 0.0
        %349 = vmatpush1.msra.mxu0 0.0
        %350 = vmatprep.subr.mxu0 0.0
        %351 = vmatpush1.msra.mxu0 0.0
        %352 = vmatprep.mubr.f32.mxu0 0.0
        %v353 = vand.u32 %v154, 4294901760
        %354 = vmatmul.mubr.f32.gmra.mrb[0].mxu0 %v353
        %v355 = vpop.f32.mrb[0].mxu0
        %v356 = vadd.f32 %v240, %v355
        %v357 = vpop.f32.mrb[0].mxu0
        %358 = vmatprep.mubr.f32.mxu0 0.0
        %v359 = vand.u32 %v157, 4294901760
        %360 = vmatmul.mubr.f32.gmra.mrb[0].mxu0 %v359
        %v361 = vpop.f32.mrb[0].mxu0
        %v362 = vadd.f32 %v250, %v361
        %v363 = vpop.f32.mrb[0].mxu0
        %364 = vmatprep.mubr.f32.mxu0 0.0
        %v365 = vand.u32 %v160, 4294901760
        %366 = vmatmul.mubr.f32.gmra.mrb[0].mxu0 %v365
        %v367 = vpop.f32.mrb[0].mxu0
        %v368 = vadd.f32 %v260, %v367
        %v369 = vpop.f32.mrb[0].mxu0
        %370 = vmatprep.mubr.f32.mxu0 0.0
        %v371 = vand.u32 %v163, 4294901760
        %372 = vmatmul.mubr.f32.gmra.mrb[0].mxu0 %v371
        %v373 = vpop.f32.mrb[0].mxu0
        %v374 = vadd.f32 %v270, %v373
        %v375 = vpop.f32.mrb[0].mxu0
        %376 = vdwg.mxu0
        %377 = vmatprep.subr.mxu0 0.0
        %v378 = vand.u32 %v149, 4294901760
        %v379 = vsub.f32 %v149, %v378
        %380 = vmatpush1.msra.mxu0 %v379
        %381 = vmatprep.subr.mxu0 0.0
        %v382 = vand.u32 %v150, 4294901760
        %v383 = vsub.f32 %v150, %v382
        %384 = vmatpush1.msra.mxu0 %v383
        %385 = vmatprep.subr.mxu0 0.0
        %v386 = vand.u32 %v151, 4294901760
        %v387 = vsub.f32 %v151, %v386
        %388 = vmatpush1.msra.mxu0 %v387
        %389 = vmatprep.subr.mxu0 0.0
        %390 = vmatpush1.msra.mxu0 0.0
        %391 = vmatprep.subr.mxu0 0.0
        %392 = vmatpush1.msra.mxu0 0.0
        %393 = vmatprep.subr.mxu0 0.0
        %394 = vmatpush1.msra.mxu0 0.0
        %395 = vmatprep.subr.mxu0 0.0
        %396 = vmatpush1.msra.mxu0 0.0
        %397 = vmatprep.subr.mxu0 0.0
        %398 = vmatpush1.msra.mxu0 0.0
        %399 = vmatprep.subr.mxu0 0.0
        %400 = vmatpush1.msra.mxu0 0.0
        %401 = vmatprep.subr.mxu0 0.0
        %402 = vmatpush1.msra.mxu0 0.0
        %403 = vmatprep.subr.mxu0 0.0
        %404 = vmatpush1.msra.mxu0 0.0
        %405 = vmatprep.subr.mxu0 0.0
        %406 = vmatpush1.msra.mxu0 0.0
        %407 = vmatprep.subr.mxu0 0.0
        %408 = vmatpush1.msra.mxu0 0.0
        %409 = vmatprep.subr.mxu0 0.0
        %410 = vmatpush1.msra.mxu0 0.0
        %411 = vmatprep.subr.mxu0 0.0
        %412 = vmatpush1.msra.mxu0 0.0
        %413 = vmatprep.subr.mxu0 0.0
        %414 = vmatpush1.msra.mxu0 0.0
        %415 = vmatprep.subr.mxu0 0.0
        %416 = vmatpush1.msra.mxu0 0.0
        %417 = vmatprep.subr.mxu0 0.0
        %418 = vmatpush1.msra.mxu0 0.0
        %419 = vmatprep.subr.mxu0 0.0
        %420 = vmatpush1.msra.mxu0 0.0
        %421 = vmatprep.subr.mxu0 0.0
        %422 = vmatpush1.msra.mxu0 0.0
        %423 = vmatprep.subr.mxu0 0.0
        %424 = vmatpush1.msra.mxu0 0.0
        %425 = vmatprep.subr.mxu0 0.0
        %426 = vmatpush1.msra.mxu0 0.0
        %427 = vmatprep.subr.mxu0 0.0
        %428 = vmatpush1.msra.mxu0 0.0
        %429 = vmatprep.subr.mxu0 0.0
        %430 = vmatpush1.msra.mxu0 0.0
        %431 = vmatprep.subr.mxu0 0.0
        %432 = vmatpush1.msra.mxu0 0.0
        %433 = vmatprep.subr.mxu0 0.0
        %434 = vmatpush1.msra.mxu0 0.0
        %435 = vmatprep.subr.mxu0 0.0
        %436 = vmatpush1.msra.mxu0 0.0
        %437 = vmatprep.subr.mxu0 0.0
        %438 = vmatpush1.msra.mxu0 0.0
        %439 = vmatprep.subr.mxu0 0.0
        %440 = vmatpush1.msra.mxu0 0.0
        %441 = vmatprep.subr.mxu0 0.0
        %442 = vmatpush1.msra.mxu0 0.0
        %443 = vmatprep.subr.mxu0 0.0
        %444 = vmatpush1.msra.mxu0 0.0
        %445 = vmatprep.subr.mxu0 0.0
        %446 = vmatpush1.msra.mxu0 0.0
        %447 = vmatprep.mubr.f32.mxu0 0.0
        %v448 = vand.u32 %v154, 4294901760
        %v449 = vsub.f32 %v154, %v448
        %450 = vmatmul.mubr.f32.gmra.mrb[0].mxu0 %v449
        %v451 = vpop.f32.mrb[0].mxu0
        %v452 = vadd.f32 %v356, %v451
        %v453 = vpop.f32.mrb[0].mxu0
        %454 = vmatprep.mubr.f32.mxu0 0.0
        %v455 = vand.u32 %v157, 4294901760
        %v456 = vsub.f32 %v157, %v455
        %457 = vmatmul.mubr.f32.gmra.mrb[0].mxu0 %v456
        %v458 = vpop.f32.mrb[0].mxu0
        %v459 = vadd.f32 %v362, %v458
        %v460 = vpop.f32.mrb[0].mxu0
        %461 = vmatprep.mubr.f32.mxu0 0.0
        %v462 = vand.u32 %v160, 4294901760
        %v463 = vsub.f32 %v160, %v462
        %464 = vmatmul.mubr.f32.gmra.mrb[0].mxu0 %v463
        %v465 = vpop.f32.mrb[0].mxu0
        %v466 = vadd.f32 %v368, %v465
        %v467 = vpop.f32.mrb[0].mxu0
        %468 = vmatprep.mubr.f32.mxu0 0.0
        %v469 = vand.u32 %v163, 4294901760
        %v470 = vsub.f32 %v163, %v469
        %471 = vmatmul.mubr.f32.gmra.mrb[0].mxu0 %v470
        %v472 = vpop.f32.mrb[0].mxu0
        %v473 = vadd.f32 %v374, %v472
        %v474 = vpop.f32.mrb[0].mxu0
        %475 = vdwg.mxu0
        %476 = vmatprep.subr.mxu0 0.0
        %v477 = vand.u32 %v149, 4294901760
        %478 = vmatpush1.msra.mxu0 %v477
        %479 = vmatprep.subr.mxu0 0.0
        %v480 = vand.u32 %v150, 4294901760
        %481 = vmatpush1.msra.mxu0 %v480
        %482 = vmatprep.subr.mxu0 0.0
        %v483 = vand.u32 %v151, 4294901760
        %484 = vmatpush1.msra.mxu0 %v483
        %485 = vmatprep.subr.mxu0 0.0
        %486 = vmatpush1.msra.mxu0 0.0
        %487 = vmatprep.subr.mxu0 0.0
        %488 = vmatpush1.msra.mxu0 0.0
        %489 = vmatprep.subr.mxu0 0.0
        %490 = vmatpush1.msra.mxu0 0.0
        %491 = vmatprep.subr.mxu0 0.0
        %492 = vmatpush1.msra.mxu0 0.0
        %493 = vmatprep.subr.mxu0 0.0
        %494 = vmatpush1.msra.mxu0 0.0
        %495 = vmatprep.subr.mxu0 0.0
        %496 = vmatpush1.msra.mxu0 0.0
        %497 = vmatprep.subr.mxu0 0.0
        %498 = vmatpush1.msra.mxu0 0.0
        %499 = vmatprep.subr.mxu0 0.0
        %500 = vmatpush1.msra.mxu0 0.0
        %501 = vmatprep.subr.mxu0 0.0
        %502 = vmatpush1.msra.mxu0 0.0
        %503 = vmatprep.subr.mxu0 0.0
        %504 = vmatpush1.msra.mxu0 0.0
        %505 = vmatprep.subr.mxu0 0.0
        %506 = vmatpush1.msra.mxu0 0.0
        %507 = vmatprep.subr.mxu0 0.0
        %508 = vmatpush1.msra.mxu0 0.0
        %509 = vmatprep.subr.mxu0 0.0
        %510 = vmatpush1.msra.mxu0 0.0
        %511 = vmatprep.subr.mxu0 0.0
        %512 = vmatpush1.msra.mxu0 0.0
        %513 = vmatprep.subr.mxu0 0.0
        %514 = vmatpush1.msra.mxu0 0.0
        %515 = vmatprep.subr.mxu0 0.0
        %516 = vmatpush1.msra.mxu0 0.0
        %517 = vmatprep.subr.mxu0 0.0
        %518 = vmatpush1.msra.mxu0 0.0
        %519 = vmatprep.subr.mxu0 0.0
        %520 = vmatpush1.msra.mxu0 0.0
        %521 = vmatprep.subr.mxu0 0.0
        %522 = vmatpush1.msra.mxu0 0.0
        %523 = vmatprep.subr.mxu0 0.0
        %524 = vmatpush1.msra.mxu0 0.0
        %525 = vmatprep.subr.mxu0 0.0
        %526 = vmatpush1.msra.mxu0 0.0
        %527 = vmatprep.subr.mxu0 0.0
        %528 = vmatpush1.msra.mxu0 0.0
        %529 = vmatprep.subr.mxu0 0.0
        %530 = vmatpush1.msra.mxu0 0.0
        %531 = vmatprep.subr.mxu0 0.0
        %532 = vmatpush1.msra.mxu0 0.0
        %533 = vmatprep.subr.mxu0 0.0
        %534 = vmatpush1.msra.mxu0 0.0
        %535 = vmatprep.subr.mxu0 0.0
        %536 = vmatpush1.msra.mxu0 0.0
        %537 = vmatprep.subr.mxu0 0.0
        %538 = vmatpush1.msra.mxu0 0.0
        %539 = vmatprep.subr.mxu0 0.0
        %540 = vmatpush1.msra.mxu0 0.0
        %541 = vmatprep.subr.mxu0 0.0
        %542 = vmatpush1.msra.mxu0 0.0
        %543 = vmatprep.mubr.f32.mxu0 0.0
        %v544 = vand.u32 %v154, 4294901760
        %v545 = vsub.f32 %v154, %v544
        %v546 = vand.u32 %v545, 4294901760
        %547 = vmatmul.mubr.f32.gmra.mrb[0].mxu0 %v546
        %v548 = vpop.f32.mrb[0].mxu0
        %v549 = vadd.f32 %v452, %v548
        %v550 = vpop.f32.mrb[0].mxu0
        %551 = vmatprep.mubr.f32.mxu0 0.0
        %v552 = vand.u32 %v157, 4294901760
        %v553 = vsub.f32 %v157, %v552
        %v554 = vand.u32 %v553, 4294901760
        %555 = vmatmul.mubr.f32.gmra.mrb[0].mxu0 %v554
        %v556 = vpop.f32.mrb[0].mxu0
        %v557 = vadd.f32 %v459, %v556
        %v558 = vpop.f32.mrb[0].mxu0
        %559 = vmatprep.mubr.f32.mxu0 0.0
        %v560 = vand.u32 %v160, 4294901760
        %v561 = vsub.f32 %v160, %v560
        %v562 = vand.u32 %v561, 4294901760
        %563 = vmatmul.mubr.f32.gmra.mrb[0].mxu0 %v562
        %v564 = vpop.f32.mrb[0].mxu0
        %v565 = vadd.f32 %v466, %v564
        %v566 = vpop.f32.mrb[0].mxu0
        %567 = vmatprep.mubr.f32.mxu0 0.0
        %v568 = vand.u32 %v163, 4294901760
        %v569 = vsub.f32 %v163, %v568
        %v570 = vand.u32 %v569, 4294901760
        %571 = vmatmul.mubr.f32.gmra.mrb[0].mxu0 %v570
        %v572 = vpop.f32.mrb[0].mxu0
        %v573 = vadd.f32 %v473, %v572
        %v574 = vpop.f32.mrb[0].mxu0
        %575 = vdwg.mxu0
        %576 = vmatprep.subr.mxu0 0.0
        %v577 = vand.u32 %v149, 4294901760
        %v578 = vsub.f32 %v149, %v577
        %v579 = vand.u32 %v578, 4294901760
        %580 = vmatpush1.msra.mxu0 %v579
        %581 = vmatprep.subr.mxu0 0.0
        %v582 = vand.u32 %v150, 4294901760
        %v583 = vsub.f32 %v150, %v582
        %v584 = vand.u32 %v583, 4294901760
        %585 = vmatpush1.msra.mxu0 %v584
        %586 = vmatprep.subr.mxu0 0.0
        %v587 = vand.u32 %v151, 4294901760
        %v588 = vsub.f32 %v151, %v587
        %v589 = vand.u32 %v588, 4294901760
        %590 = vmatpush1.msra.mxu0 %v589
        %591 = vmatprep.subr.mxu0 0.0
        %592 = vmatpush1.msra.mxu0 0.0
        %593 = vmatprep.subr.mxu0 0.0
        %594 = vmatpush1.msra.mxu0 0.0
        %595 = vmatprep.subr.mxu0 0.0
        %596 = vmatpush1.msra.mxu0 0.0
        %597 = vmatprep.subr.mxu0 0.0
        %598 = vmatpush1.msra.mxu0 0.0
        %599 = vmatprep.subr.mxu0 0.0
        %600 = vmatpush1.msra.mxu0 0.0
        %601 = vmatprep.subr.mxu0 0.0
        %602 = vmatpush1.msra.mxu0 0.0
        %603 = vmatprep.subr.mxu0 0.0
        %604 = vmatpush1.msra.mxu0 0.0
        %605 = vmatprep.subr.mxu0 0.0
        %606 = vmatpush1.msra.mxu0 0.0
        %607 = vmatprep.subr.mxu0 0.0
        %608 = vmatpush1.msra.mxu0 0.0
        %609 = vmatprep.subr.mxu0 0.0
        %610 = vmatpush1.msra.mxu0 0.0
        %611 = vmatprep.subr.mxu0 0.0
        %612 = vmatpush1.msra.mxu0 0.0
        %613 = vmatprep.subr.mxu0 0.0
        %614 = vmatpush1.msra.mxu0 0.0
        %615 = vmatprep.subr.mxu0 0.0
        %616 = vmatpush1.msra.mxu0 0.0
        %617 = vmatprep.subr.mxu0 0.0
        %618 = vmatpush1.msra.mxu0 0.0
        %619 = vmatprep.subr.mxu0 0.0
        %620 = vmatpush1.msra.mxu0 0.0
        %621 = vmatprep.subr.mxu0 0.0
        %622 = vmatpush1.msra.mxu0 0.0
        %623 = vmatprep.subr.mxu0 0.0
        %624 = vmatpush1.msra.mxu0 0.0
        %625 = vmatprep.subr.mxu0 0.0
        %626 = vmatpush1.msra.mxu0 0.0
        %627 = vmatprep.subr.mxu0 0.0
        %628 = vmatpush1.msra.mxu0 0.0
        %629 = vmatprep.subr.mxu0 0.0
        %630 = vmatpush1.msra.mxu0 0.0
        %631 = vmatprep.subr.mxu0 0.0
        %632 = vmatpush1.msra.mxu0 0.0
        %633 = vmatprep.subr.mxu0 0.0
        %634 = vmatpush1.msra.mxu0 0.0
        %635 = vmatprep.subr.mxu0 0.0
        %636 = vmatpush1.msra.mxu0 0.0
        %637 = vmatprep.subr.mxu0 0.0
        %638 = vmatpush1.msra.mxu0 0.0
        %639 = vmatprep.subr.mxu0 0.0
        %640 = vmatpush1.msra.mxu0 0.0
        %641 = vmatprep.subr.mxu0 0.0
        %642 = vmatpush1.msra.mxu0 0.0
        %643 = vmatprep.subr.mxu0 0.0
        %644 = vmatpush1.msra.mxu0 0.0
        %645 = vmatprep.subr.mxu0 0.0
        %646 = vmatpush1.msra.mxu0 0.0
        %647 = vmatprep.subr.mxu0 0.0
        %648 = vmatpush1.msra.mxu0 0.0
        %649 = vmatprep.mubr.f32.mxu0 0.0
        %v650 = vand.u32 %v154, 4294901760
        %651 = vmatmul.mubr.f32.gmra.mrb[0].mxu0 %v650
        %v652 = vpop.f32.mrb[0].mxu0
        %v653 = vadd.f32 %v549, %v652
        %v654 = vpop.f32.mrb[0].mxu0
        %655 = vmatprep.mubr.f32.mxu0 0.0
        %v656 = vand.u32 %v157, 4294901760
        %657 = vmatmul.mubr.f32.gmra.mrb[0].mxu0 %v656
        %v658 = vpop.f32.mrb[0].mxu0
        %v659 = vadd.f32 %v557, %v658
        %v660 = vpop.f32.mrb[0].mxu0
        %661 = vmatprep.mubr.f32.mxu0 0.0
        %v662 = vand.u32 %v160, 4294901760
        %663 = vmatmul.mubr.f32.gmra.mrb[0].mxu0 %v662
        %v664 = vpop.f32.mrb[0].mxu0
        %v665 = vadd.f32 %v565, %v664
        %v666 = vpop.f32.mrb[0].mxu0
        %667 = vmatprep.mubr.f32.mxu0 0.0
        %v668 = vand.u32 %v163, 4294901760
        %669 = vmatmul.mubr.f32.gmra.mrb[0].mxu0 %v668
        %v670 = vpop.f32.mrb[0].mxu0
        %v671 = vadd.f32 %v573, %v670
        %v672 = vpop.f32.mrb[0].mxu0
        %673 = vdwg.mxu0
        %674 = vmatprep.subr.mxu0 0.0
        %v675 = vand.u32 %v149, 4294901760
        %676 = vmatpush1.msra.mxu0 %v675
        %677 = vmatprep.subr.mxu0 0.0
        %v678 = vand.u32 %v150, 4294901760
        %679 = vmatpush1.msra.mxu0 %v678
        %680 = vmatprep.subr.mxu0 0.0
        %v681 = vand.u32 %v151, 4294901760
        %682 = vmatpush1.msra.mxu0 %v681
        %683 = vmatprep.subr.mxu0 0.0
        %684 = vmatpush1.msra.mxu0 0.0
        %685 = vmatprep.subr.mxu0 0.0
        %686 = vmatpush1.msra.mxu0 0.0
        %687 = vmatprep.subr.mxu0 0.0
        %688 = vmatpush1.msra.mxu0 0.0
        %689 = vmatprep.subr.mxu0 0.0
        %690 = vmatpush1.msra.mxu0 0.0
        %691 = vmatprep.subr.mxu0 0.0
        %692 = vmatpush1.msra.mxu0 0.0
        %693 = vmatprep.subr.mxu0 0.0
        %694 = vmatpush1.msra.mxu0 0.0
        %695 = vmatprep.subr.mxu0 0.0
        %696 = vmatpush1.msra.mxu0 0.0
        %697 = vmatprep.subr.mxu0 0.0
        %698 = vmatpush1.msra.mxu0 0.0
        %699 = vmatprep.subr.mxu0 0.0
        %700 = vmatpush1.msra.mxu0 0.0
        %701 = vmatprep.subr.mxu0 0.0
        %702 = vmatpush1.msra.mxu0 0.0
        %703 = vmatprep.subr.mxu0 0.0
        %704 = vmatpush1.msra.mxu0 0.0
        %705 = vmatprep.subr.mxu0 0.0
        %706 = vmatpush1.msra.mxu0 0.0
        %707 = vmatprep.subr.mxu0 0.0
        %708 = vmatpush1.msra.mxu0 0.0
        %709 = vmatprep.subr.mxu0 0.0
        %710 = vmatpush1.msra.mxu0 0.0
        %711 = vmatprep.subr.mxu0 0.0
        %712 = vmatpush1.msra.mxu0 0.0
        %713 = vmatprep.subr.mxu0 0.0
        %714 = vmatpush1.msra.mxu0 0.0
        %715 = vmatprep.subr.mxu0 0.0
        %716 = vmatpush1.msra.mxu0 0.0
        %717 = vmatprep.subr.mxu0 0.0
        %718 = vmatpush1.msra.mxu0 0.0
        %719 = vmatprep.subr.mxu0 0.0
        %720 = vmatpush1.msra.mxu0 0.0
        %721 = vmatprep.subr.mxu0 0.0
        %722 = vmatpush1.msra.mxu0 0.0
        %723 = vmatprep.subr.mxu0 0.0
        %724 = vmatpush1.msra.mxu0 0.0
        %725 = vmatprep.subr.mxu0 0.0
        %726 = vmatpush1.msra.mxu0 0.0
        %727 = vmatprep.subr.mxu0 0.0
        %728 = vmatpush1.msra.mxu0 0.0
        %729 = vmatprep.subr.mxu0 0.0
        %730 = vmatpush1.msra.mxu0 0.0
        %731 = vmatprep.subr.mxu0 0.0
        %732 = vmatpush1.msra.mxu0 0.0
        %733 = vmatprep.subr.mxu0 0.0
        %734 = vmatpush1.msra.mxu0 0.0
        %735 = vmatprep.subr.mxu0 0.0
        %736 = vmatpush1.msra.mxu0 0.0
        %737 = vmatprep.subr.mxu0 0.0
        %738 = vmatpush1.msra.mxu0 0.0
        %739 = vmatprep.subr.mxu0 0.0
        %740 = vmatpush1.msra.mxu0 0.0
        %741 = vmatprep.mubr.f32.mxu0 0.0
        %v742 = vand.u32 %v154, 4294901760
        %743 = vmatmul.mubr.f32.gmra.mrb[0].mxu0 %v742
        %v744 = vpop.f32.mrb[0].mxu0
        %v745 = vadd.f32 %v653, %v744
        %v746 = vpop.f32.mrb[0].mxu0
        %747 = vmatprep.mubr.f32.mxu0 0.0
        %v748 = vand.u32 %v157, 4294901760
        %749 = vmatmul.mubr.f32.gmra.mrb[0].mxu0 %v748
        %v750 = vpop.f32.mrb[0].mxu0
        %v751 = vadd.f32 %v659, %v750
        %v752 = vpop.f32.mrb[0].mxu0
        %753 = vmatprep.mubr.f32.mxu0 0.0
        %v754 = vand.u32 %v160, 4294901760
        %755 = vmatmul.mubr.f32.gmra.mrb[0].mxu0 %v754
        %v756 = vpop.f32.mrb[0].mxu0
        %v757 = vadd.f32 %v665, %v756
        %v758 = vpop.f32.mrb[0].mxu0
        %759 = vmatprep.mubr.f32.mxu0 0.0
        %v760 = vand.u32 %v163, 4294901760
        %761 = vmatmul.mubr.f32.gmra.mrb[0].mxu0 %v760
        %v762 = vpop.f32.mrb[0].mxu0
        %v763 = vadd.f32 %v671, %v762
        %v764 = vpop.f32.mrb[0].mxu0
        %765 = vdwg.mxu0
        %v766 = vmul.f32 %v745, 1.442695
        %v767 = vpow.pop %v766
        %v768 = vmul.f32 %v751, 1.442695
        %v769 = vpow.pop %v768
        %v770 = vmul.f32 %v757, 1.442695
        %v771 = vpow.pop %v770
        %v772 = vmul.f32 %v763, 1.442695
        %v773 = vpow.pop %v772
        %774 = vst [vmem:[%s137] sm:$0xff] %v767
        %775 = vst [vmem:[%s137 + $0x8] sm:$0xff] %v769
        %776 = vst [vmem:[%s137 + $0x10] sm:$0xff] %v771
        %777 = vst [vmem:[%s137 + $0x18] sm:$0xff] %v773
        %s778 = sand.u32 %s71, 1
        %s779 = scalar_lea.sflag [#allocation3], %s778
        %s780 = sand.u32 %s71, 1
        %s781 = smul.addr %s780, 32
        %s782 = scalar_lea.vmem [#allocation2], %s781
        // Predicated region
        $region29: #{tpu_custom_call.1} parent=27 // pred_check
          %p783 = pneg %p81
        $region30: #{tpu_custom_call.1} parent=27 // pred_check_branch
          %785 = sbr.rel (%p783) target = $region32
        $region31: #{tpu_custom_call.1} parent=27 // pred_region
          %s786 = smul.u32 4, %s16
          %s788 = ssub.s32 512, 512
          %789 = vsyncadd %s779, %s788
          %s790 = smul.addr %s786, 128
          %s791 = scalar_lea.hbm %s2, %s790
          %s792 = sshll.u32 %s782, 4
          %s793 = int_to_ptr.vmem [resolvable:$true] %s792
          %798 = dma.vmem_to_hbm [thread:$0]  %s793, 512, %s791, %s779, 128, 128, 8
        $region32: #{tpu_custom_call.1} parent=27 // pred_fallthru
          _
      $region28: #{tpu_custom_call.1} parent=5 // pred_fallthru
        _
      %p799 = scmp.le.s32.totalorder 2, %s11
      // Predicated region
      $region33: #{tpu_custom_call.1} parent=5 // pred_check
        %p800 = pneg %p799
      $region34: #{tpu_custom_call.1} parent=5 // pred_check_branch
        %802 = sbr.rel (%p800) target = $region36
      $region35: #{tpu_custom_call.1} parent=5 // pred_region
        %s803 = ssub.s32 %s11, 2
        // Predicated region
        $region37: #{tpu_custom_call.1} parent=35 // pred_check
          %p804 = pneg %p87
        $region38: #{tpu_custom_call.1} parent=35 // pred_check_branch
          %806 = sbr.rel (%p804) target = $region40
        $region39: #{tpu_custom_call.1} parent=35 // pred_region
          %s807 = sand.u32 %s72, 1
          %s808 = scalar_lea.sflag [#allocation3], %s807
          %s809 = sand.u32 %s72, 1
          %s810 = smul.addr %s809, 32
          %s811 = scalar_lea.vmem [#allocation2], %s810
          %812 = dma.done %s808, 512
        $region40: #{tpu_custom_call.1} parent=35 // pred_fallthru
          _
      $region36: #{tpu_custom_call.1} parent=5 // pred_fallthru
        _
    $region6: #{tpu_custom_call.1} parent=1 // loop_footer
      %s15 = sadd.s32 1, %s11
    $region7: #{tpu_custom_call.1} parent=1 // loop_footer_branch
      %10 = sbr.rel target = $region3
    $region8: #{tpu_custom_call.1} parent=1 // loop_exit
      _
    %813 = vsyncpa [#allocation3], 1
    %s814 = scalar_lea.sflag [#allocation3], 1
    %815 = vsyncpa %s814, 1

</llo_original>
